<compile_context>
chip_gen: v6e
topology: v6e:2x2x1
jax: 0.10.0
libtpu: 0.0.40
codegen_flags: <defaults>
</compile_context>

<pallas_src>
import functools

import jax
import jax.numpy as jnp
from jax.experimental import pallas as pl
from jax.experimental.pallas import tpu as pltpu

LANE = 128   # TPU lane width
HIDDEN = 64  # fc1/fc2 width from the PyTorch module


def _round_up(x, m):
    return ((x + m - 1) // m) * m


def _batch_tiling(B, block_b):
    """Pick (bb, B_pad, n_tiles) for the batch grid.

    - padding waste is at most ~8 rows per tile (not up to block_b-1),
    - batches >= 1024 always get >= 2 grid steps so v7x's two TensorCores can
      split the "parallel" axis (neutral on 1-TC v5e/v6e).
    """
    B8 = _round_up(max(B, 1), 8)
    n_tiles = pl.cdiv(B8, block_b)
    if B8 >= 1024:
        n_tiles = max(n_tiles, 2)
    bb = _round_up(pl.cdiv(B8, n_tiles), 8)
    B_pad = n_tiles * bb
    return bb, B_pad, n_tiles


# ----------------------------------------------------------------------------
# Kernel: fused 3-layer MLP for one batch tile.
#   x_ref  : [bb, S]            bf16 (cast once in the wrapper)
#   wN_ref : [in, out]          bf16 (pre-transposed; w3 zero-padded to 128)
#   b1/b2  : [1, 64]            f32
#   b3_ref : [1, action_size]   f32
#   o_ref  : [bb, action_size]  f32 (narrow output -> 32x less HBM writeback)
# ----------------------------------------------------------------------------
def mlp_kernel(x_ref, w1_ref, b1_ref, w2_ref, b2_ref, w3_ref, b3_ref, o_ref):
    a = o_ref.shape[-1]  # action_size (static)

    # fc1 + ReLU
    h1 = jnp.dot(x_ref[...], w1_ref[...], preferred_element_type=jnp.float32)
    h1 = jnp.maximum(h1 + b1_ref[...], 0.0)                       # [bb, 64] f32

    # fc2 + ReLU
    h2 = jnp.dot(h1.astype(jnp.bfloat16), w2_ref[...],
                 preferred_element_type=jnp.float32)
    h2 = jnp.maximum(h2 + b2_ref[...], 0.0)                       # [bb, 64] f32

    # fc3 (no activation); w3 is lane-padded to 128 for a clean MXU shape,
    # but only the first `action_size` columns are stored.
    out = jnp.dot(h2.astype(jnp.bfloat16), w3_ref[...],
                  preferred_element_type=jnp.float32)             # [bb, 128]
    o_ref[...] = (out[:, :a] + b3_ref[...]).astype(o_ref.dtype)   # [bb, a]


# ----------------------------------------------------------------------------
# One-time parameter preparation (do NOT run per forward call).
# Takes PyTorch-layout params {wN: [out, in], bN: [out]} and returns the
# kernel-layout pytree: wN transposed to [in, out] bf16, biases [1, out] f32,
# fc3 weight zero-padded to a 128-lane-aligned width (bias stays unpadded).
# ----------------------------------------------------------------------------
def prepare_params(params):
    action_size = params["w3"].shape[0]
    hidden = params["w1"].shape[0]
    n_pad = _round_up(max(action_size, LANE), LANE)

    w1t = params["w1"].T.astype(jnp.bfloat16)                     # [S, 64]
    w2t = params["w2"].T.astype(jnp.bfloat16)                     # [64, 64]
    w3t = jnp.zeros((hidden, n_pad), jnp.bfloat16)
    w3t = w3t.at[:, :action_size].set(params["w3"].T.astype(jnp.bfloat16))

    b1 = params["b1"].astype(jnp.float32)[None, :]                # [1, 64]
    b2 = params["b2"].astype(jnp.float32)[None, :]                # [1, 64]
    b3 = params["b3"].astype(jnp.float32)[None, :]                # [1, A]

    return {"w1t": w1t, "b1": b1, "w2t": w2t, "b2": b2, "w3t": w3t, "b3": b3}


# ----------------------------------------------------------------------------
# Forward pass. `prep` is the output of prepare_params.
# ----------------------------------------------------------------------------
def network_forward(x, prep, action_size, block_b=2048):
    B, S = x.shape
    n_pad = prep["w3t"].shape[1]
    bb, B_pad, n_tiles = _batch_tiling(B, block_b)

    # Cast once here (not per tile in the kernel); pad batch to the tile grid.
    x = x.astype(jnp.bfloat16)
    if B_pad != B:
        x = jnp.pad(x, ((0, B_pad - B), (0, 0)))

    bcast = lambda i: (0, 0)  # weights/biases: same block for every grid step

    flops = 2 * B_pad * (S * HIDDEN + HIDDEN * HIDDEN + HIDDEN * n_pad)
    bytes_accessed = (
        B_pad * S * 2                                   # x (bf16)
        + (prep["w1t"].size + prep["w2t"].size + prep["w3t"].size) * 2
        + (prep["b1"].size + prep["b2"].size + prep["b3"].size) * 4
        + B_pad * action_size * 4)                      # narrow f32 output

    out = pl.pallas_call(
        mlp_kernel,
        out_shape=jax.ShapeDtypeStruct((B_pad, action_size), jnp.float32),
        grid=(n_tiles,),
        in_specs=[
            pl.BlockSpec((bb, S), lambda i: (i, 0)),
            pl.BlockSpec(prep["w1t"].shape, bcast),
            pl.BlockSpec(prep["b1"].shape, bcast),
            pl.BlockSpec(prep["w2t"].shape, bcast),
            pl.BlockSpec(prep["b2"].shape, bcast),
            pl.BlockSpec(prep["w3t"].shape, bcast),
            pl.BlockSpec(prep["b3"].shape, bcast),
        ],
        out_specs=pl.BlockSpec((bb, action_size), lambda i: (i, 0)),
        compiler_params=pltpu.CompilerParams(
            dimension_semantics=("parallel",)),
        cost_estimate=pl.CostEstimate(flops=flops, transcendentals=0,
                                      bytes_accessed=bytes_accessed),
    )(x, prep["w1t"], prep["b1"], prep["w2t"], prep["b2"],
      prep["w3t"], prep["b3"])

    # No column slice needed anymore; only trim padded rows (tiny read) if any.
    return out if B_pad == B else out[:B]


# ----------------------------------------------------------------------------
# Deterministic init matching PyTorch nn.Linear default (U(-1/sqrt(fan_in), +)),
# in PyTorch layout: w: [out, in], b: [out].
# ----------------------------------------------------------------------------
def init_params(key, state_size, action_size):
    def linear(key, fan_in, fan_out):
        kw, kb = jax.random.split(key)
        bound = 1.0 / jnp.sqrt(fan_in)
        w = jax.random.uniform(kw, (fan_out, fan_in), jnp.float32, -bound, bound)
        b = jax.random.uniform(kb, (fan_out,), jnp.float32, -bound, bound)
        return w, b

    k1, k2, k3 = jax.random.split(key, 3)
    w1, b1 = linear(k1, state_size, HIDDEN)
    w2, b2 = linear(k2, HIDDEN, HIDDEN)
    w3, b3 = linear(k3, HIDDEN, action_size)
    return {"w1": w1, "b1": b1, "w2": w2, "b2": b2, "w3": w3, "b3": b3}


if __name__ == "__main__":
    state_size = 8    # LunarLander-v2 observation dim
    action_size = 4   # LunarLander-v2 action dim
    batch = 8

    key = jax.random.PRNGKey(0)
    pkey, xkey = jax.random.split(key)
    params = init_params(pkey, state_size, action_size)      # PyTorch layout
    prep = prepare_params(params)                             # kernel layout (once)
    x = jax.random.normal(xkey, (batch, state_size), jnp.float32)

    # Jit the whole forward (cast + pad + kernel + row-trim) as one program.
    fwd = jax.jit(functools.partial(network_forward, action_size=action_size))
    out = jax.block_until_ready(fwd(x, prep))

    # Pure-JAX f32 reference (PyTorch semantics). bf16 matmul inputs with f32
    # accumulation => relaxed tolerance.
    h = jnp.maximum(x @ params["w1"].T + params["b1"], 0.0)
    h = jnp.maximum(h @ params["w2"].T + params["b2"], 0.0)
    ref = h @ params["w3"].T + params["b3"]

    assert out.shape == (batch, action_size)
    assert jnp.allclose(out, ref, atol=3e-2, rtol=3e-2), "mismatch vs reference"

    # TODO(synk): downstream DQN ops (gather Q[s,a] / max_a Q) are not fused
    # into the kernel; fusing them would shrink the output further.
    print("KERNEL_OK")
</pallas_src>

<mosaic_0001>
module attributes {stable_mosaic.version = 11 : i64} {
  func.func @mlp_kernel(%arg0: i32, %arg1: memref<8x8xbf16, #tpu.memory_space<vmem>>, %arg2: memref<8x64xbf16, #tpu.memory_space<vmem>>, %arg3: memref<1x64xf32, #tpu.memory_space<vmem>>, %arg4: memref<64x64xbf16, #tpu.memory_space<vmem>>, %arg5: memref<1x64xf32, #tpu.memory_space<vmem>>, %arg6: memref<64x128xbf16, #tpu.memory_space<vmem>>, %arg7: memref<1x4xf32, #tpu.memory_space<vmem>>, %arg8: memref<8x4xf32, #tpu.memory_space<vmem>>) attributes {dimension_semantics = [#tpu.dimension_semantics<parallel>], iteration_bounds = array<i64: 1>, scalar_prefetch = 0 : i64, scratch_operands = 0 : i64, tpu.core_type = #tpu.core_type<tc>, window_params = [{transform_indices = @transform_0, window_bounds = array<i64: 8, 8>}, {pipeline_mode = #tpu.pipeline_mode<synchronous>, transform_indices = @transform_1, window_bounds = array<i64: 8, 64>}, {pipeline_mode = #tpu.pipeline_mode<synchronous>, transform_indices = @transform_2, window_bounds = array<i64: 1, 64>}, {pipeline_mode = #tpu.pipeline_mode<synchronous>, transform_indices = @transform_3, window_bounds = array<i64: 64, 64>}, {pipeline_mode = #tpu.pipeline_mode<synchronous>, transform_indices = @transform_4, window_bounds = array<i64: 1, 64>}, {pipeline_mode = #tpu.pipeline_mode<synchronous>, transform_indices = @transform_5, window_bounds = array<i64: 64, 128>}, {pipeline_mode = #tpu.pipeline_mode<synchronous>, transform_indices = @transform_6, window_bounds = array<i64: 1, 4>}, {transform_indices = @transform_7, window_bounds = array<i64: 8, 4>}]} {
    %c0 = arith.constant 0 : index
    %c0_0 = arith.constant 0 : index
    %0 = vector.load %arg1[%c0, %c0_0] : memref<8x8xbf16, #tpu.memory_space<vmem>>, vector<8x8xbf16>
    %c0_1 = arith.constant 0 : index
    %c0_2 = arith.constant 0 : index
    %1 = vector.load %arg2[%c0_1, %c0_2] : memref<8x64xbf16, #tpu.memory_space<vmem>>, vector<8x64xbf16>
    %cst = arith.constant dense<0.000000e+00> : vector<8x64xf32>
    %2 = tpu.matmul %0, %1, %cst {dimension_numbers = #tpu.dot_dimension_numbers<[1], [0], [0], [1], [0, 0, 1, 1], [], []>} : vector<8x8xbf16>, vector<8x64xbf16>, vector<8x64xf32> -> vector<8x64xf32>
    %c0_3 = arith.constant 0 : index
    %c0_4 = arith.constant 0 : index
    %3 = vector.load %arg3[%c0_3, %c0_4] : memref<1x64xf32, #tpu.memory_space<vmem>>, vector<1x64xf32>
    %4 = vector.broadcast %3 : vector<1x64xf32> to vector<8x64xf32>
    %5 = arith.addf %2, %4 : vector<8x64xf32>
    %cst_5 = arith.constant 0.000000e+00 : f32
    %6 = vector.broadcast %cst_5 : f32 to vector<8x64xf32>
    %7 = arith.maximumf %5, %6 : vector<8x64xf32>
    %8 = arith.truncf %7 : vector<8x64xf32> to vector<8x64xbf16>
    %c0_6 = arith.constant 0 : index
    %c0_7 = arith.constant 0 : index
    %9 = vector.load %arg4[%c0_6, %c0_7] : memref<64x64xbf16, #tpu.memory_space<vmem>>, vector<64x64xbf16>
    %cst_8 = arith.constant dense<0.000000e+00> : vector<8x64xf32>
    %10 = tpu.matmul %8, %9, %cst_8 {dimension_numbers = #tpu.dot_dimension_numbers<[1], [0], [0], [1], [0, 0, 1, 1], [], []>} : vector<8x64xbf16>, vector<64x64xbf16>, vector<8x64xf32> -> vector<8x64xf32>
    %c0_9 = arith.constant 0 : index
    %c0_10 = arith.constant 0 : index
    %11 = vector.load %arg5[%c0_9, %c0_10] : memref<1x64xf32, #tpu.memory_space<vmem>>, vector<1x64xf32>
    %12 = vector.broadcast %11 : vector<1x64xf32> to vector<8x64xf32>
    %13 = arith.addf %10, %12 : vector<8x64xf32>
    %cst_11 = arith.constant 0.000000e+00 : f32
    %14 = vector.broadcast %cst_11 : f32 to vector<8x64xf32>
    %15 = arith.maximumf %13, %14 : vector<8x64xf32>
    %16 = arith.truncf %15 : vector<8x64xf32> to vector<8x64xbf16>
    %c0_12 = arith.constant 0 : index
    %c0_13 = arith.constant 0 : index
    %17 = vector.load %arg6[%c0_12, %c0_13] : memref<64x128xbf16, #tpu.memory_space<vmem>>, vector<64x128xbf16>
    %cst_14 = arith.constant dense<0.000000e+00> : vector<8x128xf32>
    %18 = tpu.matmul %16, %17, %cst_14 {dimension_numbers = #tpu.dot_dimension_numbers<[1], [0], [0], [1], [0, 0, 1, 1], [], []>} : vector<8x64xbf16>, vector<64x128xbf16>, vector<8x128xf32> -> vector<8x128xf32>
    %19 = vector.extract_strided_slice %18 {offsets = [0, 0], sizes = [8, 4], strides = [1, 1]} : vector<8x128xf32> to vector<8x4xf32>
    %c0_15 = arith.constant 0 : index
    %c0_16 = arith.constant 0 : index
    %20 = vector.load %arg7[%c0_15, %c0_16] : memref<1x4xf32, #tpu.memory_space<vmem>>, vector<1x4xf32>
    %21 = vector.broadcast %20 : vector<1x4xf32> to vector<8x4xf32>
    %22 = arith.addf %19, %21 : vector<8x4xf32>
    %c0_17 = arith.constant 0 : index
    %c0_18 = arith.constant 0 : index
    %23 = vector.load %arg8[%c0_17, %c0_18] : memref<8x4xf32, #tpu.memory_space<vmem>>, vector<8x4xf32>
    tpu.vector_store %arg8[%c0_17, %c0_18], %22 {strides = array<i32>} : memref<8x4xf32, #tpu.memory_space<vmem>>, vector<8x4xf32>,
    return
  }
  func.func @transform_0(%arg0: i32) -> (i32, i32) {
    %c0_i32 = arith.constant 0 : i32
    %c0_i32_0 = arith.constant 0 : i32
    return %arg0, %c0_i32 : i32, i32
  }
  func.func @transform_1(%arg0: i32) -> (i32, i32) {
    %c0_i32 = arith.constant 0 : i32
    %c0_i32_0 = arith.constant 0 : i32
    %c0_i32_1 = arith.constant 0 : i32
    return %c0_i32, %c0_i32_0 : i32, i32
  }
  func.func @transform_2(%arg0: i32) -> (i32, i32) {
    %c0_i32 = arith.constant 0 : i32
    %c0_i32_0 = arith.constant 0 : i32
    %c0_i32_1 = arith.constant 0 : i32
    return %c0_i32, %c0_i32_0 : i32, i32
  }
  func.func @transform_3(%arg0: i32) -> (i32, i32) {
    %c0_i32 = arith.constant 0 : i32
    %c0_i32_0 = arith.constant 0 : i32
    %c0_i32_1 = arith.constant 0 : i32
    return %c0_i32, %c0_i32_0 : i32, i32
  }
  func.func @transform_4(%arg0: i32) -> (i32, i32) {
    %c0_i32 = arith.constant 0 : i32
    %c0_i32_0 = arith.constant 0 : i32
    %c0_i32_1 = arith.constant 0 : i32
    return %c0_i32, %c0_i32_0 : i32, i32
  }
  func.func @transform_5(%arg0: i32) -> (i32, i32) {
    %c0_i32 = arith.constant 0 : i32
    %c0_i32_0 = arith.constant 0 : i32
    %c0_i32_1 = arith.constant 0 : i32
    return %c0_i32, %c0_i32_0 : i32, i32
  }
  func.func @transform_6(%arg0: i32) -> (i32, i32) {
    %c0_i32 = arith.constant 0 : i32
    %c0_i32_0 = arith.constant 0 : i32
    %c0_i32_1 = arith.constant 0 : i32
    return %c0_i32, %c0_i32_0 : i32, i32
  }
  func.func @transform_7(%arg0: i32) -> (i32, i32) {
    %c0_i32 = arith.constant 0 : i32
    %c0_i32_0 = arith.constant 0 : i32
    return %arg0, %c0_i32 : i32, i32
  }
}

</mosaic_0001>

<llo_original>
// kernel: network_forward.1
$region0: #{network_forward.1}
  #allocation0 [shape = 'u32[]', space=smem, size = 0x4, offset = 0x4, fixed_abs, tag = 'smem constant byte address 0x4 - core index']
  #allocation1 [shape = 'u32[144,128]{1,0:T(1,128)}', space=vmem, size = 0x12000, scoped, tag = 'internal scratch']
  %s0 = inlined_call_operand.vmem [shape: bf16[8,8], index: 0, kind: input, shape index: {}]
  %s1 = inlined_call_operand.vmem [shape: bf16[8,64], index: 1, kind: input, shape index: {}]
  %s2 = inlined_call_operand.vmem [shape: f32[1,64], index: 2, kind: input, shape index: {}]
  %s3 = inlined_call_operand.hbm [shape: bf16[64,64], index: 3, kind: input, shape index: {}]
  %s4 = inlined_call_operand.vmem [shape: f32[1,64], index: 4, kind: input, shape index: {}]
  %s5 = inlined_call_operand.hbm [shape: bf16[64,128], index: 5, kind: input, shape index: {}]
  %s6 = inlined_call_operand.vmem [shape: f32[1,4], index: 6, kind: input, shape index: {}]
  %s7 = inlined_call_operand.vmem [shape: f32[8,4], index: 7, kind: output, shape index: {}]
  %s8 = sld [smem:[#allocation0]]
  $region46: #{network_forward.1} parent=0
    _
  %s10 = ssub.s32 1, %s8
  %s11 = scalar_select 0, %s10, %s8
  $region1: #{network_forward.1} parent=0
    #allocation2 [shape = 'u8[16384]{0}', space=vmem, size = 0x4000, scoped, tag = 'input window, operand 3, single buffered']
    #allocation3 [shape = 's32[1]{0}', space=sflag, size = 0x4, scoped, tag = 'scoped memory for network_forward.1']
    #allocation4 [shape = 'u8[16384]{0}', space=vmem, size = 0x4000, scoped, tag = 'input window, operand 5, single buffered']
    #allocation5 [shape = 's32[1]{0}', space=sflag, size = 0x4, scoped, tag = 'scoped memory for network_forward.1']
    %12 = vsyncpa [#allocation3], 0
    %13 = vsyncpa [#allocation5], 0
    // Predicated region
    $region2: #{network_forward.1} parent=1 // pred_check
      _
    $region3: #{network_forward.1} parent=1 // pred_check_branch
      %15 = sbr.rel (0) target = $region5
    $region4: #{network_forward.1} parent=1 // pred_region
      _
    $region5: #{network_forward.1} parent=1 // pred_fallthru
      _
    // Predicated region
    $region6: #{network_forward.1} parent=1 // pred_check
      _
    $region7: #{network_forward.1} parent=1 // pred_check_branch
      %17 = sbr.rel (0) target = $region9
    $region8: #{network_forward.1} parent=1 // pred_region
      _
    $region9: #{network_forward.1} parent=1 // pred_fallthru
      _
    // Predicated region
    $region10: #{network_forward.1} parent=1 // pred_check
      _
    $region11: #{network_forward.1} parent=1 // pred_check_branch
      %19 = sbr.rel (0) target = $region13
    $region12: #{network_forward.1} parent=1 // pred_region
      _
    $region13: #{network_forward.1} parent=1 // pred_fallthru
      _
    // Predicated region
    $region14: #{network_forward.1} parent=1 // pred_check
      _
    $region15: #{network_forward.1} parent=1 // pred_check_branch
      %21 = sbr.rel (0) target = $region17
    $region16: #{network_forward.1} parent=1 // pred_region
      %s23 = ssub.s32 512, 512
      %24 = vsyncadd [#allocation3], %s23
      %s25 = sshll.u32 [#allocation2], 4
      %s26 = int_to_ptr.vmem [resolvable:$true] %s25
      %31 = dma.hbm_to_vmem [thread:$0]  %s3, 512, %s26, [#allocation3], 64, 64, 4
    $region17: #{network_forward.1} parent=1 // pred_fallthru
      _
    // Predicated region
    $region18: #{network_forward.1} parent=1 // pred_check
      _
    $region19: #{network_forward.1} parent=1 // pred_check_branch
      %33 = sbr.rel (0) target = $region21
    $region20: #{network_forward.1} parent=1 // pred_region
      _
    $region21: #{network_forward.1} parent=1 // pred_fallthru
      _
    // Predicated region
    $region22: #{network_forward.1} parent=1 // pred_check
      _
    $region23: #{network_forward.1} parent=1 // pred_check_branch
      %35 = sbr.rel (0) target = $region25
    $region24: #{network_forward.1} parent=1 // pred_region
      %s37 = ssub.s32 512, 512
      %38 = vsyncadd [#allocation5], %s37
      %s39 = sshll.u32 [#allocation4], 4
      %s40 = int_to_ptr.vmem [resolvable:$true] %s39
      %45 = dma.hbm_to_vmem [thread:$0]  %s5, 512, %s40, [#allocation5], 64, 64, 4
    $region25: #{network_forward.1} parent=1 // pred_fallthru
      _
    // Predicated region
    $region26: #{network_forward.1} parent=1 // pred_check
      _
    $region27: #{network_forward.1} parent=1 // pred_check_branch
      %47 = sbr.rel (0) target = $region29
    $region28: #{network_forward.1} parent=1 // pred_region
      _
    $region29: #{network_forward.1} parent=1 // pred_fallthru
      _
    // Predicated region
    $region30: #{network_forward.1} parent=1 // pred_check
      _
    $region31: #{network_forward.1} parent=1 // pred_check_branch
      %49 = sbr.rel (0) target = $region33
    $region32: #{network_forward.1} parent=1 // pred_region
      %50 = dma.done [#allocation3], 512
    $region33: #{network_forward.1} parent=1 // pred_fallthru
      _
    // Predicated region
    $region34: #{network_forward.1} parent=1 // pred_check
      _
    $region35: #{network_forward.1} parent=1 // pred_check_branch
      %52 = sbr.rel (0) target = $region37
    $region36: #{network_forward.1} parent=1 // pred_region
      %53 = dma.done [#allocation5], 512
    $region37: #{network_forward.1} parent=1 // pred_fallthru
      _
    %v55 = vld [vmem:[%s0] sm:$0xf]
    %v56 = vld [vmem:[%s1] sm:$0xf]
    %v57 = vld [vmem:[%s2] sm:$0x1]
    %v59 = vlaneseq
    %v60 = vshrl.u32 %v59, 7
    %v61 = vsub.s32 0, %v60
    %v62 = vrot.slane %v57, %v61
    %vm64 = vcmask 64512
    %v66 = vsel %vm64, %v55, 0
    %vm68 = vcmask 1043456
    %v70 = vsel %vm68, %v56, 0
    %72 = vmatprep.subr.bf16.mxu0 0
    %73 = vmatpush1.bf16.msra.mxu0 0
    %74 = vmatprep.subr.bf16.mxu0 0
    %75 = vmatpush1.bf16.msra.mxu0 0
    %76 = vmatprep.subr.bf16.mxu0 0
    %77 = vmatpush1.bf16.msra.mxu0 0
    %78 = vmatprep.subr.bf16.mxu0 0
    %79 = vmatpush1.bf16.msra.mxu0 0
    %80 = vmatprep.subr.bf16.mxu0 0
    %81 = vmatpush1.bf16.msra.mxu0 0
    %82 = vmatprep.subr.bf16.mxu0 0
    %83 = vmatpush1.bf16.msra.mxu0 0
    %84 = vmatprep.subr.bf16.mxu0 0
    %85 = vmatpush1.bf16.msra.mxu0 0
    %86 = vmatprep.subr.bf16.mxu0 0
    %87 = vmatpush1.bf16.msra.mxu0 %v70
    %88 = vmatprep.subr.bf16.mxu0 0
    %89 = vmatpush2.bf16.msra.mxu0 0
    %90 = vmatprep.subr.bf16.mxu0 0
    %91 = vmatpush2.bf16.msra.mxu0 0
    %92 = vmatprep.subr.bf16.mxu0 0
    %93 = vmatpush2.bf16.msra.mxu0 0
    %94 = vmatprep.subr.bf16.mxu0 0
    %95 = vmatpush2.bf16.msra.mxu0 0
    %96 = vmatprep.subr.bf16.mxu0 0
    %97 = vmatpush2.bf16.msra.mxu0 0
    %98 = vmatprep.subr.bf16.mxu0 0
    %99 = vmatpush2.bf16.msra.mxu0 0
    %100 = vmatprep.subr.bf16.mxu0 0
    %101 = vmatpush2.bf16.msra.mxu0 0
    %102 = vmatprep.subr.bf16.mxu0 0
    %103 = vmatpush2.bf16.msra.mxu0 0
    %104 = vmatprep.mubr.bf16.mxu0 0
    %105 = vmatmul.mubr.bf16.gmra.mxu0 %v66
    %v106 = vpop.f32.mrf.mxu0
    %v107 = vadd.f32 %v62, %v106
    %v108 = vpop.f32.mrf.mxu0
    %v109 = vpop.f32.mrf.mxu0
    %v110 = vpop.f32.mrf.mxu0
    %111 = vdwg.mxu0
    %v112 = vmax.f32 %v107, 0.0
    %v113 = vpack.c.bf16 %v112, %v112
    %v114 = vld [vmem:[#allocation2] sm:$0xf]
    %v115 = vld [vmem:[#allocation2 + $0x4] sm:$0xf]
    %v116 = vld [vmem:[#allocation2 + $0x8] sm:$0xf]
    %v117 = vld [vmem:[#allocation2 + $0xc] sm:$0xf]
    %v118 = vld [vmem:[#allocation2 + $0x10] sm:$0xf]
    %v119 = vld [vmem:[#allocation2 + $0x14] sm:$0xf]
    %v120 = vld [vmem:[#allocation2 + $0x18] sm:$0xf]
    %v121 = vld [vmem:[#allocation2 + $0x1c] sm:$0xf]
    %v122 = vld [vmem:[%s4] sm:$0x1]
    %v124 = vlaneseq
    %v125 = vshrl.u32 %v124, 7
    %v126 = vsub.s32 0, %v125
    %v127 = vrot.slane %v122, %v126
    %v137 = vunpack.c.l.b16 %v114
    %v138 = vunpack.c.l.b16 %v115
    %v139 = vunpack.c.l.b16 %v116
    %v140 = vunpack.c.l.b16 %v117
    %v141 = vunpack.c.l.b16 %v118
    %v142 = vunpack.c.l.b16 %v119
    %v143 = vunpack.c.l.b16 %v120
    %v144 = vunpack.c.l.b16 %v121
    %v145 = vpack.c.b16 %v138, %v137
    %v146 = vpack.c.b16 %v140, %v139
    %v147 = vpack.c.b16 %v142, %v141
    %v148 = vpack.c.b16 %v144, %v143
    %vm153 = vcmask 523264
    %v155 = vsel %vm153, %v113, 0
    %157 = vmatprep.subr.bf16.mxu0 0
    %158 = vmatpush1.bf16.msra.mxu0 0
    %159 = vmatprep.subr.bf16.mxu0 0
    %160 = vmatpush1.bf16.msra.mxu0 0
    %161 = vmatprep.subr.bf16.mxu0 0
    %162 = vmatpush1.bf16.msra.mxu0 0
    %163 = vmatprep.subr.bf16.mxu0 0
    %164 = vmatpush1.bf16.msra.mxu0 0
    %165 = vmatprep.subr.bf16.mxu0 0
    %166 = vmatpush1.bf16.msra.mxu0 %v148
    %167 = vmatprep.subr.bf16.mxu0 0
    %168 = vmatpush1.bf16.msra.mxu0 %v147
    %169 = vmatprep.subr.bf16.mxu0 0
    %170 = vmatpush1.bf16.msra.mxu0 %v146
    %171 = vmatprep.subr.bf16.mxu0 0
    %172 = vmatpush1.bf16.msra.mxu0 %v145
    %173 = vmatprep.subr.bf16.mxu0 0
    %174 = vmatpush2.bf16.msra.mxu0 0
    %175 = vmatprep.subr.bf16.mxu0 0
    %176 = vmatpush2.bf16.msra.mxu0 0
    %177 = vmatprep.subr.bf16.mxu0 0
    %178 = vmatpush2.bf16.msra.mxu0 0
    %179 = vmatprep.subr.bf16.mxu0 0
    %180 = vmatpush2.bf16.msra.mxu0 0
    %181 = vmatprep.subr.bf16.mxu0 0
    %182 = vmatpush2.bf16.msra.mxu0 0
    %183 = vmatprep.subr.bf16.mxu0 0
    %184 = vmatpush2.bf16.msra.mxu0 0
    %185 = vmatprep.subr.bf16.mxu0 0
    %186 = vmatpush2.bf16.msra.mxu0 0
    %187 = vmatprep.subr.bf16.mxu0 0
    %188 = vmatpush2.bf16.msra.mxu0 0
    %189 = vmatprep.mubr.bf16.mxu0 0
    %190 = vmatmul.mubr.bf16.gmra.mxu0 %v155
    %v191 = vpop.f32.mrf.mxu0
    %v192 = vadd.f32 %v127, %v191
    %v193 = vpop.f32.mrf.mxu0
    %v194 = vpop.f32.mrf.mxu0
    %v195 = vpop.f32.mrf.mxu0
    %196 = vdwg.mxu0
    %v197 = vmax.f32 %v192, 0.0
    %v198 = vpack.c.bf16 %v197, %v197
    %v199 = vld [vmem:[#allocation4] sm:$0xf]
    %v200 = vld [vmem:[#allocation4 + $0x4] sm:$0xf]
    %v201 = vld [vmem:[#allocation4 + $0x8] sm:$0xf]
    %v202 = vld [vmem:[#allocation4 + $0xc] sm:$0xf]
    %v203 = vld [vmem:[#allocation4 + $0x10] sm:$0xf]
    %v204 = vld [vmem:[#allocation4 + $0x14] sm:$0xf]
    %v205 = vld [vmem:[#allocation4 + $0x18] sm:$0xf]
    %v206 = vld [vmem:[#allocation4 + $0x1c] sm:$0xf]
    %v215 = vunpack.c.l.b16 %v199
    %v216 = vunpack.c.l.b16 %v200
    %v217 = vunpack.c.l.b16 %v201
    %v218 = vunpack.c.l.b16 %v202
    %v219 = vunpack.c.l.b16 %v203
    %v220 = vunpack.c.l.b16 %v204
    %v221 = vunpack.c.l.b16 %v205
    %v222 = vunpack.c.l.b16 %v206
    %v223 = vpack.c.b16 %v216, %v215
    %v224 = vpack.c.b16 %v218, %v217
    %v225 = vpack.c.b16 %v220, %v219
    %v226 = vpack.c.b16 %v222, %v221
    %v232 = vsel %vm153, %v198, 0
    %234 = vmatprep.subr.bf16.mxu0 0
    %235 = vmatpush1.bf16.msra.mxu0 0
    %236 = vmatprep.subr.bf16.mxu0 0
    %237 = vmatpush1.bf16.msra.mxu0 0
    %238 = vmatprep.subr.bf16.mxu0 0
    %239 = vmatpush1.bf16.msra.mxu0 0
    %240 = vmatprep.subr.bf16.mxu0 0
    %241 = vmatpush1.bf16.msra.mxu0 0
    %242 = vmatprep.subr.bf16.mxu0 0
    %243 = vmatpush1.bf16.msra.mxu0 %v226
    %244 = vmatprep.subr.bf16.mxu0 0
    %245 = vmatpush1.bf16.msra.mxu0 %v225
    %246 = vmatprep.subr.bf16.mxu0 0
    %247 = vmatpush1.bf16.msra.mxu0 %v224
    %248 = vmatprep.subr.bf16.mxu0 0
    %249 = vmatpush1.bf16.msra.mxu0 %v223
    %250 = vmatprep.subr.bf16.mxu0 0
    %251 = vmatpush2.bf16.msra.mxu0 0
    %252 = vmatprep.subr.bf16.mxu0 0
    %253 = vmatpush2.bf16.msra.mxu0 0
    %254 = vmatprep.subr.bf16.mxu0 0
    %255 = vmatpush2.bf16.msra.mxu0 0
    %256 = vmatprep.subr.bf16.mxu0 0
    %257 = vmatpush2.bf16.msra.mxu0 0
    %258 = vmatprep.subr.bf16.mxu0 0
    %259 = vmatpush2.bf16.msra.mxu0 0
    %260 = vmatprep.subr.bf16.mxu0 0
    %261 = vmatpush2.bf16.msra.mxu0 0
    %262 = vmatprep.subr.bf16.mxu0 0
    %263 = vmatpush2.bf16.msra.mxu0 0
    %264 = vmatprep.subr.bf16.mxu0 0
    %265 = vmatpush2.bf16.msra.mxu0 0
    %266 = vmatprep.mubr.bf16.mxu0 0
    %267 = vmatmul.mubr.bf16.gmra.mxu0 %v232
    %v268 = vpop.f32.mrf.mxu0
    %v269 = vadd.f32 0.0, %v268
    %v270 = vpop.f32.mrf.mxu0
    %v271 = vpop.f32.mrf.mxu0
    %v272 = vpop.f32.mrf.mxu0
    %273 = vdwg.mxu0
    %v274 = vld [vmem:[%s6] sm:$0x1]
    %v276 = vlaneseq
    %v277 = vshrl.u32 %v276, 7
    %v278 = vsub.s32 0, %v277
    %v279 = vrot.slane %v274, %v278
    %v281 = vadd.f32 %v269, %v279
    %vm282 = vcmask 31744
    %283 = vst.msk [vmem:[%s7] sm:$0xff] %vm282, %v281
    // Predicated region
    $region38: #{network_forward.1} parent=1 // pred_check
      _
    $region39: #{network_forward.1} parent=1 // pred_check_branch
      %285 = sbr.rel (0) target = $region41
    $region40: #{network_forward.1} parent=1 // pred_region
      _
    $region41: #{network_forward.1} parent=1 // pred_fallthru
      _
    // Predicated region
    $region42: #{network_forward.1} parent=1 // pred_check
      _
    $region43: #{network_forward.1} parent=1 // pred_check_branch
      %287 = sbr.rel (0) target = $region45
    $region44: #{network_forward.1} parent=1 // pred_region
      _
    $region45: #{network_forward.1} parent=1 // pred_fallthru
      _
    %288 = vsyncpa [#allocation3], 1
    %289 = vsyncpa [#allocation5], 1

</llo_original>
